<compile_context>
chip_gen: v5e
topology: v5e:2x2
jax: 0.10.0
libtpu: 0.0.40
codegen_flags: <defaults>
</compile_context>

<pallas_src>
import functools

import jax
import jax.numpy as jnp
from jax.experimental import pallas as pl
from jax.experimental.pallas import tpu as pltpu


def _ce_ls_kernel(x_ref, t_ref, o_ref, *, epsilon, num_classes, batch, tile_b, ragged):
    pid = pl.program_id(0)

    x = x_ref[...].astype(jnp.float32)          # (TILE_B, C) logits
    t = t_ref[...]                              # (TILE_B, 1) int32 labels

    # Numerically stable log-softmax pieces (exp/log go to the EUP slot).
    m = jnp.max(x, axis=1, keepdims=True)
    z = x - m
    lse = jnp.log(jnp.sum(jnp.exp(z), axis=1, keepdims=True))   # (TILE_B, 1)

    # Fused weighted reduction: loss_b = lse - sum_c w_c * z_c,
    # with w_c = 1-eps+eps/C at the target class and eps/C elsewhere
    # (sum_c smoothed_c == 1, so the lse term has unit weight).
    cls_ids = jax.lax.broadcasted_iota(jnp.int32, z.shape, 1)
    w_on = 1.0 - epsilon + epsilon / num_classes
    w_off = epsilon / num_classes
    w = jnp.where(cls_ids == t, w_on, w_off)
    loss_rows = lse - jnp.sum(z * w, axis=1, keepdims=True)     # (TILE_B, 1)

    if ragged:
        # Only needed when B % tile_b != 0: the last tile's trailing rows are
        # out-of-bounds garbage.  Must stay a select (jnp.where), not a
        # multiply, so NaN/Inf in garbage rows cannot leak into the sum.
        row_ids = pid * tile_b + jax.lax.broadcasted_iota(jnp.int32, loss_rows.shape, 0)
        loss_rows = jnp.where(row_ids < batch, loss_rows, 0.0)

    # One f32 partial sum per tile -> SMEM output block; no cross-step state,
    # so the batch axis can be megacore-parallel.
    o_ref[0, 0] = jnp.sum(loss_rows)


def cross_entropy_label_smooth(inputs, targets, num_classes, epsilon=0.1, tile_b=None):
    """inputs: (B, C) float logits; targets: (B,) int labels. Returns scalar f32 loss."""
    B, C = inputs.shape
    assert C == num_classes

    # Sublane alignment: bf16 packs 16 rows per vreg tile, f32 packs 8.
    row_align = 16 if inputs.dtype == jnp.bfloat16 else 8
    itemsize = jnp.dtype(inputs.dtype).itemsize

    if tile_b is None:
        # Target ~8 MiB of logits per tile (amortizes per-grid-step overhead),
        # capped at 2048 rows; 2x double-buffered tiles stay well inside the
        # scoped-VMEM budget on every generation.
        tile_budget_bytes = 8 * 1024 * 1024
        rows = tile_budget_bytes // max(1, C * itemsize)
        tile_b = min(2048, max(row_align, rows))
    tile_b = max(row_align, (int(tile_b) // row_align) * row_align)
    # Don't make the tile bigger than the (aligned) batch itself.
    tile_b = min(tile_b, ((B + row_align - 1) // row_align) * row_align)

    num_tiles = pl.cdiv(B, tile_b)
    ragged = (B % tile_b) != 0

    targets_2d = targets.astype(jnp.int32).reshape(B, 1)

    kernel = functools.partial(
        _ce_ls_kernel,
        epsilon=float(epsilon),
        num_classes=C,
        batch=B,
        tile_b=tile_b,
        ragged=ragged,
    )

    # VMEM budget: 2x double-buffered logit tiles + targets tiles + headroom,
    # hard-capped at 48 MiB so the request always fits v7x physical VMEM (64 MiB).
    logits_tile_bytes = tile_b * C * itemsize
    vmem_limit = int(min(48 * 1024 * 1024,
                         max(16 * 1024 * 1024, 4 * logits_tile_bytes + (2 << 20))))

    partials = pl.pallas_call(
        kernel,
        out_shape=jax.ShapeDtypeStruct((num_tiles, 1), jnp.float32),
        grid=(num_tiles,),
        in_specs=[
            pl.BlockSpec((tile_b, C), lambda i: (i, 0)),
            pl.BlockSpec((tile_b, 1), lambda i: (i, 0)),
        ],
        # One scalar partial sum per tile, written to its own SMEM block.
        out_specs=pl.BlockSpec((1, 1), lambda i: (i, 0),
                               memory_space=pltpu.MemorySpace.SMEM),
        compiler_params=pltpu.CompilerParams(
            # No cross-step carried state -> megacore can shard the batch axis.
            dimension_semantics=("parallel",),
            vmem_limit_bytes=vmem_limit,
        ),
    )(inputs, targets_2d)

    # Mean over the *global* (unpadded) batch.
    return jnp.sum(partials) / jnp.float32(B)


def _reference(inputs, targets, num_classes, epsilon=0.1):
    log_probs = jax.nn.log_softmax(inputs.astype(jnp.float32), axis=1)
    onehot = jax.nn.one_hot(targets, num_classes, dtype=jnp.float32)
    smoothed = (1.0 - epsilon) * onehot + epsilon / num_classes
    return (-smoothed * log_probs).mean(0).sum()


if __name__ == "__main__":
    key = jax.random.PRNGKey(0)

    # Case 1: small, single-tile.
    batch, num_classes = 8, 16
    k1, k2, k3, k4 = jax.random.split(key, 4)
    logits = jax.random.normal(k1, (batch, num_classes), dtype=jnp.float32)
    labels = jax.random.randint(k2, (batch,), 0, num_classes, dtype=jnp.int32)
    loss = jax.block_until_ready(
        cross_entropy_label_smooth(logits, labels, num_classes, epsilon=0.1))
    ref = _reference(logits, labels, num_classes, epsilon=0.1)
    assert jnp.allclose(loss, ref, atol=1e-5, rtol=1e-5), (loss, ref)

    # Case 2: multi-tile grid with a ragged last tile (exercises the row mask
    # and the per-tile partial-sum output; no wrapper-side padding anymore).
    batch2, num_classes2 = 50, 37
    logits2 = jax.random.normal(k3, (batch2, num_classes2), dtype=jnp.float32)
    labels2 = jax.random.randint(k4, (batch2,), 0, num_classes2, dtype=jnp.int32)
    loss2 = jax.block_until_ready(
        cross_entropy_label_smooth(logits2, labels2, num_classes2, epsilon=0.1, tile_b=16))
    ref2 = _reference(logits2, labels2, num_classes2, epsilon=0.1)
    assert jnp.allclose(loss2, ref2, atol=1e-5, rtol=1e-5), (loss2, ref2)

    print("KERNEL_OK")
</pallas_src>

<mosaic_0001>
module attributes {stable_mosaic.version = 11 : i64} {
  func.func @_ce_ls_kernel(%arg0: i32, %arg1: memref<8x16xf32, #tpu.memory_space<vmem>>, %arg2: memref<8x1xi32, #tpu.memory_space<vmem>>, %arg3: memref<1x1xf32, #tpu.memory_space<smem>>) attributes {dimension_semantics = [#tpu.dimension_semantics<parallel>], iteration_bounds = array<i64: 1>, scalar_prefetch = 0 : i64, scratch_operands = 0 : i64, tpu.core_type = #tpu.core_type<tc>, window_params = [{transform_indices = @transform_0, window_bounds = array<i64: 8, 16>}, {transform_indices = @transform_1, window_bounds = array<i64: 8, 1>}, {transform_indices = @transform_2, window_bounds = array<i64: 1, 1>}]} {
    %c0 = arith.constant 0 : index
    %c0_0 = arith.constant 0 : index
    %0 = vector.load %arg1[%c0, %c0_0] : memref<8x16xf32, #tpu.memory_space<vmem>>, vector<8x16xf32>
    %c0_1 = arith.constant 0 : index
    %c0_2 = arith.constant 0 : index
    %1 = vector.load %arg2[%c0_1, %c0_2] : memref<8x1xi32, #tpu.memory_space<vmem>>, vector<8x1xi32>
    %cst = arith.constant dense<0xFF800000> : vector<8xf32>
    %2 = vector.multi_reduction <maximumf>, %0, %cst [1] : vector<8x16xf32> to vector<8xf32>
    %3 = vector.shape_cast %2 : vector<8xf32> to vector<8x1xf32>
    %4 = vector.broadcast %3 : vector<8x1xf32> to vector<8x16xf32>
    %5 = arith.subf %0, %4 : vector<8x16xf32>
    %6 = math.exp %5 : vector<8x16xf32>
    %cst_3 = arith.constant dense<0.000000e+00> : vector<8xf32>
    %7 = vector.multi_reduction <add>, %6, %cst_3 [1] : vector<8x16xf32> to vector<8xf32>
    %8 = vector.shape_cast %7 : vector<8xf32> to vector<8x1xf32>
    %9 = math.log %8 : vector<8x1xf32>
    %10 = tpu.iota {dimensions = array<i32: 1>} : vector<8x16xi32>
    %11 = vector.broadcast %1 : vector<8x1xi32> to vector<8x16xi32>
    %12 = arith.cmpi eq, %10, %11 : vector<8x16xi32>
    %cst_4 = arith.constant 9.062500e-01 : f32
    %cst_5 = arith.constant 6.250000e-03 : f32
    %13 = vector.broadcast %cst_4 : f32 to vector<8x16xf32>
    %14 = vector.broadcast %cst_5 : f32 to vector<8x16xf32>
    %15 = arith.select %12, %13, %14 : vector<8x16xi1>, vector<8x16xf32>
    %16 = arith.mulf %5, %15 : vector<8x16xf32>
    %cst_6 = arith.constant dense<0.000000e+00> : vector<8xf32>
    %17 = vector.multi_reduction <add>, %16, %cst_6 [1] : vector<8x16xf32> to vector<8xf32>
    %18 = vector.shape_cast %17 : vector<8xf32> to vector<8x1xf32>
    %19 = arith.subf %9, %18 : vector<8x1xf32>
    %20 = vector.shape_cast %19 : vector<8x1xf32> to vector<1x8x1xf32>
    %cst_7 = arith.constant dense<0.000000e+00> : vector<1xf32>
    %21 = vector.multi_reduction <add>, %20, %cst_7 [1, 2] : vector<1x8x1xf32> to vector<1xf32>
    %22 = vector.shape_cast %21 : vector<1xf32> to vector<1x1x1xf32>
    %23 = vector.extract %22[0, 0, 0] : f32 from vector<1x1x1xf32>
    %c0_8 = arith.constant 0 : index
    %c0_9 = arith.constant 0 : index
    %24 = memref.load %arg3[%c0_8, %c0_9] : memref<1x1xf32, #tpu.memory_space<smem>>
    memref.store %23, %arg3[%c0_8, %c0_9] : memref<1x1xf32, #tpu.memory_space<smem>>
    return
  }
  func.func @transform_0(%arg0: i32) -> (i32, i32) {
    %c0_i32 = arith.constant 0 : i32
    %c0_i32_0 = arith.constant 0 : i32
    return %arg0, %c0_i32 : i32, i32
  }
  func.func @transform_1(%arg0: i32) -> (i32, i32) {
    %c0_i32 = arith.constant 0 : i32
    %c0_i32_0 = arith.constant 0 : i32
    return %arg0, %c0_i32 : i32, i32
  }
  func.func @transform_2(%arg0: i32) -> (i32, i32) {
    %c0_i32 = arith.constant 0 : i32
    %c0_i32_0 = arith.constant 0 : i32
    return %arg0, %c0_i32 : i32, i32
  }
}

</mosaic_0001>

<llo_original>
// kernel: tpu_custom_call.1
$region0: #{tpu_custom_call.1}
  #allocation0 [shape = 'u32[]', space=smem, size = 0x4, offset = 0x4, fixed_abs, tag = 'smem constant byte address 0x4 - core index']
  #allocation1 [shape = 'u32[72,128]{1,0:T(1,128)}', space=vmem, size = 0x9000, scoped, tag = 'internal scratch']
  %s0 = inlined_call_operand.vmem [shape: f32[8,16], index: 0, kind: input, shape index: {}]
  %s1 = inlined_call_operand.vmem [shape: s32[8,1], index: 1, kind: input, shape index: {}]
  %s2 = inlined_call_operand.hbm [shape: f32[1,1], index: 2, kind: output, shape index: {}]
  %s3 = sld [smem:[#allocation0]]
  $region18: #{tpu_custom_call.1} parent=0
    _
  %s5 = ssub.s32 1, %s3
  %s6 = scalar_select 0, %s5, %s3
  $region1: #{tpu_custom_call.1} parent=0
    #allocation2 [shape = 'u8[512]{0}', space=smem, size = 0x200, scoped, tag = 'output window, operand 0, single buffered']
    #allocation3 [shape = 's32[1]{0}', space=sflag, size = 0x4, scoped, tag = 'scoped memory for tpu_custom_call.1']
    %7 = vsyncpa [#allocation3], 0
    // Predicated region
    $region2: #{tpu_custom_call.1} parent=1 // pred_check
      _
    $region3: #{tpu_custom_call.1} parent=1 // pred_check_branch
      %9 = sbr.rel (0) target = $region5
    $region4: #{tpu_custom_call.1} parent=1 // pred_region
      _
    $region5: #{tpu_custom_call.1} parent=1 // pred_fallthru
      _
    // Predicated region
    $region6: #{tpu_custom_call.1} parent=1 // pred_check
      _
    $region7: #{tpu_custom_call.1} parent=1 // pred_check_branch
      %11 = sbr.rel (0) target = $region9
    $region8: #{tpu_custom_call.1} parent=1 // pred_region
      _
    $region9: #{tpu_custom_call.1} parent=1 // pred_fallthru
      _
    %v12 = vld [vmem:[%s0] sm:$0xff]
    %v13 = vld [vmem:[%s1] sm:$0xff]
    %vm14 = vcmask 130048
    %v15 = vsel %vm14, %v12, -inf
    %16 = vmax.xlane.f32.xlu0 %v15
    %v17 = vpop.xlane.xlu0 %16
    %v18 = vsub.f32 %v12, %v17
    %v19 = vmul.f32 %v18, 1.442695
    %v20 = vpow.pop %v19
    %v21 = vsel %vm14, %v20, 0.0
    %22 = vadd.xlane.f32.xlu0 %v21
    %v23 = vpop.xlane.xlu0 %22
    %v24 = vlog2.pop %v23
    %v25 = vmul.f32 %v24, 0.6931472
    %v26 = vlaneseq
    %v27 = vand.u32 %v26, 127
    %28 = vset.pattern.permute.xlu0 0
    %29 = vperm.xlu0 %28, %v13
    %v30 = vpop.permute.xlu0 %29
    %vm31 = vcmp.eq.s32.totalorder %v27, %v30
    %v32 = vsel %vm31, 0.90625, 0.00625
    %v33 = vmul.f32 %v18, %v32
    %v34 = vsel %vm14, %v33, 0.0
    %35 = vadd.xlane.f32.xlu0 %v34
    %v36 = vpop.xlane.xlu0 %35
    %v37 = vsub.f32 %v25, %v36
    %vm38 = vcmask 7168
    %v39 = vsel %vm38, %v37, 0.0
    %40 = vadd.xlane.f32.xlu0 %v39
    %v41 = vpop.xlane.xlu0 %40
    %v42 = vrot.slane %v41, 4
    %v43 = vadd.f32 %v41, %v42
    %v44 = vrot.slane %v43, 2
    %v45 = vadd.f32 %v43, %v44
    %v46 = vrot.slane %v45, 1
    %v47 = vadd.f32 %v45, %v46
    %s48 = vtos %v47
    %s49 = scalar_lea.smem [#allocation2], 0
    %50 = sst [smem:[%s49]] %s48
    // Predicated region
    $region10: #{tpu_custom_call.1} parent=1 // pred_check
      _
    $region11: #{tpu_custom_call.1} parent=1 // pred_check_branch
      %52 = sbr.rel (0) target = $region13
    $region12: #{tpu_custom_call.1} parent=1 // pred_region
      %54 = vsyncadd [#allocation3], 0
      %s56 = sshll.u32 %s2, 4
      %s57 = int_to_ptr.hbm [resolvable:$true] %s56
      %59 = dma.smem_to_hbm [#allocation2], 16, %s57, [#allocation3]
    $region13: #{tpu_custom_call.1} parent=1 // pred_fallthru
      _
    // Predicated region
    $region14: #{tpu_custom_call.1} parent=1 // pred_check
      _
    $region15: #{tpu_custom_call.1} parent=1 // pred_check_branch
      %61 = sbr.rel (0) target = $region17
    $region16: #{tpu_custom_call.1} parent=1 // pred_region
      %63 = dma.done [#allocation3], 16
    $region17: #{tpu_custom_call.1} parent=1 // pred_fallthru
      _
    %64 = sfence
    %65 = vsyncpa [#allocation3], 1

</llo_original>
